<compile_context>
chip_gen: v7x
topology: tpu7x:2x2x1
jax: 0.10.0
libtpu: 0.0.40
codegen_flags: <defaults>
</compile_context>

<pallas_src>
import functools

import jax
import jax.numpy as jnp
from jax.experimental import pallas as pl
from jax.experimental.pallas import tpu as pltpu


def transition_kernel(scale_ref, shift_ref, w_ref, pw_ref, x_ref, o_ref,
                      acc_ref, *, row_pairs, width):
    # scale_ref / shift_ref : (Cin, 1)  f32 folded BN scale / shift
    # w_ref                 : (Cout, Cin) bf16 1x1-conv weight
    # pw_ref                : (W, Wo)   bf16 W-direction pool matrix (0.25s)
    # x_ref                 : (1, Cin, SR*W)   one row-strip, spatial on lanes
    # o_ref                 : (1, Cout, SRo*Wo)
    # acc_ref               : (Cin, SRo*Wo) f32 VMEM scratch (pooled acts)
    W = width
    Wo = W // 2

    # BatchNorm (folded, f32) + ReLU on the whole strip (VPU, full lanes).
    x = x_ref[0].astype(jnp.float32)                              # (Cin, SR*W)
    y = jnp.maximum(x * scale_ref[...] + shift_ref[...], 0.0)     # f32

    # Separable 2x2 average pool (replaces the old dense (HW, HoWo) matmul):
    #   H-direction: add the two contiguous lane slices of each row pair.
    #   W-direction: one tiny (W, Wo) matmul with 0.25 entries, bf16 x bf16
    #                operands, f32 accumulation.
    for r in range(row_pairs):
        top = y[:, (2 * r) * W:(2 * r + 1) * W]                   # row 2r
        bot = y[:, (2 * r + 1) * W:(2 * r + 2) * W]               # row 2r + 1
        hsum = (top + bot).astype(pw_ref.dtype)                   # (Cin, W) bf16
        acc_ref[:, r * Wo:(r + 1) * Wo] = jnp.dot(
            hsum, pw_ref[...], preferred_element_type=jnp.float32)

    # 1x1 conv on the *pooled* activations (pool and 1x1 conv commute):
    # one MXU matmul, output already in the final (Cout, Ho*Wo) layout.
    acts = acc_ref[...].astype(w_ref.dtype)                       # bf16
    o_ref[0] = jnp.dot(w_ref[...], acts,
                       preferred_element_type=jnp.float32).astype(o_ref.dtype)

    # TODO(synk): training-mode dropout (dropRate > 0) is not implemented
    # (module default dropRate=0.0 makes it a no-op).


def _pick_num_strips(H, W):
    """Largest strip count whose flat in/out widths stay 128-lane aligned."""
    Wo = W // 2
    for s in (8, 4, 2):
        if H % s:
            continue
        sr = H // s
        if sr % 2:
            continue
        if (sr * W) % 128 == 0 and ((sr // 2) * Wo) % 128 == 0:
            return s
    return 1


def transition_block(x_nchw, gamma, beta, conv_w, drop_rate=0.0, eps=1e-5,
                     running_mean=None, running_var=None):
    """TransitionBlock forward: (N, Cin, H, W) -> (N, Cout, H/2, W/2)."""
    if drop_rate > 0.0:
        # TODO(synk): dropout path not implemented (module default is 0.0).
        raise NotImplementedError("dropRate > 0 is not supported")

    N, Cin, H, W = x_nchw.shape
    assert H % 2 == 0 and W % 2 == 0, "avg_pool2d(2) needs even H and W"
    Cout = conv_w.shape[0]
    Ho, Wo = H // 2, W // 2

    # --- BatchNorm statistics: single fused f32 pass over x -----------------
    if running_mean is None or running_var is None:
        xf = x_nchw.astype(jnp.float32)
        mean = jnp.mean(xf, axis=(0, 2, 3))
        mean_sq = jnp.mean(xf * xf, axis=(0, 2, 3))   # fused with mean by XLA
        var = jnp.maximum(mean_sq - mean * mean, 0.0)  # biased var (BN fwd)
    else:
        mean = running_mean.astype(jnp.float32)
        var = running_var.astype(jnp.float32)
    scale = gamma.astype(jnp.float32) * jax.lax.rsqrt(var + eps)
    shift = beta.astype(jnp.float32) - mean * scale

    # --- row-strip tiling (more parallel programs, smaller VMEM per step) ---
    strips = _pick_num_strips(H, W)
    SR = H // strips          # input rows per program
    SRo = SR // 2             # output rows per program

    # Free reshapes only (NCHW contiguous): spatial flattened onto lanes.
    x_flat = x_nchw.reshape(N, Cin, H * W)
    w_mat = conv_w[:, :, 0, 0].astype(jnp.bfloat16)               # (Cout, Cin)
    # W-direction pool matrix: column wo has 0.25 at w = 2wo, 2wo+1.
    pw = (((jnp.arange(W)[:, None] // 2) == jnp.arange(Wo)[None, :])
          .astype(jnp.float32) * 0.25).astype(jnp.bfloat16)       # (W, Wo)

    kernel = functools.partial(transition_kernel, row_pairs=SRo, width=W)

    # --- explicit VMEM budget (generous, clamped for v7x's 64 MiB) ----------
    xb = jnp.dtype(x_nchw.dtype).itemsize
    est = (2 * Cin * SR * W * xb            # double-buffered input block
           + 2 * Cout * SRo * Wo * xb       # double-buffered output block
           + Cin * SRo * Wo * 4             # pooled-activation scratch
           + 6 * Cin * SR * W * 4           # f32/bf16 intermediates (y, slices)
           + 4 * Cout * SRo * Wo * 4        # conv result
           + 4 * (2 * Cin + Cout * Cin + W * Wo) * 4)   # tiny constants
    vmem_limit = int(min(max(2 * est + (8 << 20), 32 << 20), 64 << 20))

    out_flat = pl.pallas_call(
        kernel,
        out_shape=jax.ShapeDtypeStruct((N, Cout, Ho * Wo), x_nchw.dtype),
        grid_spec=pltpu.PrefetchScalarGridSpec(
            num_scalar_prefetch=0,
            grid=(N, strips),
            in_specs=[
                pl.BlockSpec((Cin, 1), lambda n, s: (0, 0)),
                pl.BlockSpec((Cin, 1), lambda n, s: (0, 0)),
                pl.BlockSpec((Cout, Cin), lambda n, s: (0, 0)),
                pl.BlockSpec((W, Wo), lambda n, s: (0, 0)),
                pl.BlockSpec((1, Cin, SR * W), lambda n, s: (n, 0, s)),
            ],
            out_specs=pl.BlockSpec((1, Cout, SRo * Wo), lambda n, s: (n, 0, s)),
            scratch_shapes=[pltpu.VMEM((Cin, SRo * Wo), jnp.float32)],
        ),
        compiler_params=pltpu.CompilerParams(
            dimension_semantics=("parallel", "parallel"),
            vmem_limit_bytes=vmem_limit),
    )(scale.reshape(Cin, 1), shift.reshape(Cin, 1), w_mat, pw, x_flat)

    # Output is already NCHW-flat; reshape (free) back to 4-D.
    return out_flat.reshape(N, Cout, Ho, Wo)


def transition_block_ref(x, gamma, beta, conv_w, eps=1e-5):
    """Pure-JAX reference (NCHW, mirrors the PyTorch forward)."""
    mean = x.mean(axis=(0, 2, 3), keepdims=True)
    var = x.var(axis=(0, 2, 3), keepdims=True)
    xn = (x - mean) / jnp.sqrt(var + eps)
    xn = xn * gamma.reshape(1, -1, 1, 1) + beta.reshape(1, -1, 1, 1)
    y = jnp.maximum(xn, 0.0)
    z = jax.lax.conv_general_dilated(
        y, conv_w, window_strides=(1, 1), padding="VALID",
        dimension_numbers=("NCHW", "OIHW", "NCHW"))
    N, C, H, W = z.shape
    return z.reshape(N, C, H // 2, 2, W // 2, 2).mean(axis=(3, 5))


if __name__ == "__main__":
    in_planes, out_planes = 4, 8
    N, H, W = 2, 16, 16

    key = jax.random.PRNGKey(0)
    kx, kg, kb, kw = jax.random.split(key, 4)
    x = jax.random.normal(kx, (N, in_planes, H, W), dtype=jnp.float32)
    gamma = 1.0 + 0.1 * jax.random.normal(kg, (in_planes,), dtype=jnp.float32)
    beta = 0.1 * jax.random.normal(kb, (in_planes,), dtype=jnp.float32)
    conv_w = 0.2 * jax.random.normal(
        kw, (out_planes, in_planes, 1, 1), dtype=jnp.float32)

    out = jax.block_until_ready(transition_block(x, gamma, beta, conv_w))
    ref = transition_block_ref(x, gamma, beta, conv_w)

    assert out.shape == (N, out_planes, H // 2, W // 2), out.shape
    max_err = float(jnp.max(jnp.abs(out - ref)))
    # bf16 MXU operands (f32 accumulation) -> small deviation from f32 ref.
    assert jnp.allclose(out, ref, rtol=2e-2, atol=2e-2), max_err

    print("KERNEL_OK")
</pallas_src>

<mosaic_0001>
module attributes {stable_mosaic.version = 11 : i64} {
  func.func @transition_kernel(%arg0: i32, %arg1: i32, %arg2: memref<4x1xf32, #tpu.memory_space<vmem>>, %arg3: memref<4x1xf32, #tpu.memory_space<vmem>>, %arg4: memref<8x4xbf16, #tpu.memory_space<vmem>>, %arg5: memref<16x8xbf16, #tpu.memory_space<vmem>>, %arg6: memref<1x4x256xf32, #tpu.memory_space<vmem>>, %arg7: memref<1x8x64xf32, #tpu.memory_space<vmem>>, %arg8: memref<4x64xf32, #tpu.memory_space<vmem>>) attributes {dimension_semantics = [#tpu.dimension_semantics<parallel>, #tpu.dimension_semantics<parallel>], iteration_bounds = array<i64: 2, 1>, scalar_prefetch = 0 : i64, scratch_operands = 1 : i64, tpu.core_type = #tpu.core_type<tc>, window_params = [{pipeline_mode = #tpu.pipeline_mode<synchronous>, transform_indices = @transform_0, window_bounds = array<i64: 4, 1>}, {pipeline_mode = #tpu.pipeline_mode<synchronous>, transform_indices = @transform_1, window_bounds = array<i64: 4, 1>}, {pipeline_mode = #tpu.pipeline_mode<synchronous>, transform_indices = @transform_2, window_bounds = array<i64: 8, 4>}, {pipeline_mode = #tpu.pipeline_mode<synchronous>, transform_indices = @transform_3, window_bounds = array<i64: 16, 8>}, {transform_indices = @transform_4, window_bounds = array<i64: 1, 4, 256>}, {transform_indices = @transform_5, window_bounds = array<i64: 1, 8, 64>}]} {
    %c0 = arith.constant 0 : index
    %c0_0 = arith.constant 0 : index
    %c0_1 = arith.constant 0 : index
    %0 = vector.load %arg6[%c0, %c0_0, %c0_1] : memref<1x4x256xf32, #tpu.memory_space<vmem>>, vector<1x4x256xf32>
    %1 = vector.shape_cast %0 : vector<1x4x256xf32> to vector<4x256xf32>
    %c0_2 = arith.constant 0 : index
    %c0_3 = arith.constant 0 : index
    %2 = vector.load %arg2[%c0_2, %c0_3] : memref<4x1xf32, #tpu.memory_space<vmem>>, vector<4x1xf32>
    %3 = vector.broadcast %2 : vector<4x1xf32> to vector<4x256xf32>
    %4 = arith.mulf %1, %3 : vector<4x256xf32>
    %c0_4 = arith.constant 0 : index
    %c0_5 = arith.constant 0 : index
    %5 = vector.load %arg3[%c0_4, %c0_5] : memref<4x1xf32, #tpu.memory_space<vmem>>, vector<4x1xf32>
    %6 = vector.broadcast %5 : vector<4x1xf32> to vector<4x256xf32>
    %7 = arith.addf %4, %6 : vector<4x256xf32>
    %cst = arith.constant 0.000000e+00 : f32
    %8 = vector.broadcast %cst : f32 to vector<4x256xf32>
    %9 = arith.maximumf %7, %8 : vector<4x256xf32>
    %10 = vector.extract_strided_slice %9 {offsets = [0, 0], sizes = [4, 16], strides = [1, 1]} : vector<4x256xf32> to vector<4x16xf32>
    %11 = vector.extract_strided_slice %9 {offsets = [0, 16], sizes = [4, 16], strides = [1, 1]} : vector<4x256xf32> to vector<4x16xf32>
    %12 = arith.addf %10, %11 : vector<4x16xf32>
    %13 = arith.truncf %12 : vector<4x16xf32> to vector<4x16xbf16>
    %c0_6 = arith.constant 0 : index
    %c0_7 = arith.constant 0 : index
    %14 = vector.load %arg5[%c0_6, %c0_7] : memref<16x8xbf16, #tpu.memory_space<vmem>>, vector<16x8xbf16>
    %cst_8 = arith.constant dense<0.000000e+00> : vector<4x8xf32>
    %15 = tpu.matmul %13, %14, %cst_8 {dimension_numbers = #tpu.dot_dimension_numbers<[1], [0], [0], [1], [0, 0, 1, 1], [], []>} : vector<4x16xbf16>, vector<16x8xbf16>, vector<4x8xf32> -> vector<4x8xf32>
    %c0_9 = arith.constant 0 : index
    %c0_10 = arith.constant 0 : index
    %16 = vector.load %arg8[%c0_9, %c0_10] : memref<4x64xf32, #tpu.memory_space<vmem>>, vector<4x8xf32>
    tpu.vector_store %arg8[%c0_9, %c0_10], %15 {strides = array<i32>} : memref<4x64xf32, #tpu.memory_space<vmem>>, vector<4x8xf32>,
    %17 = vector.extract_strided_slice %9 {offsets = [0, 32], sizes = [4, 16], strides = [1, 1]} : vector<4x256xf32> to vector<4x16xf32>
    %18 = vector.extract_strided_slice %9 {offsets = [0, 48], sizes = [4, 16], strides = [1, 1]} : vector<4x256xf32> to vector<4x16xf32>
    %19 = arith.addf %17, %18 : vector<4x16xf32>
    %20 = arith.truncf %19 : vector<4x16xf32> to vector<4x16xbf16>
    %c0_11 = arith.constant 0 : index
    %c0_12 = arith.constant 0 : index
    %21 = vector.load %arg5[%c0_11, %c0_12] : memref<16x8xbf16, #tpu.memory_space<vmem>>, vector<16x8xbf16>
    %cst_13 = arith.constant dense<0.000000e+00> : vector<4x8xf32>
    %22 = tpu.matmul %20, %21, %cst_13 {dimension_numbers = #tpu.dot_dimension_numbers<[1], [0], [0], [1], [0, 0, 1, 1], [], []>} : vector<4x16xbf16>, vector<16x8xbf16>, vector<4x8xf32> -> vector<4x8xf32>
    %c0_14 = arith.constant 0 : index
    %c8 = arith.constant 8 : index
    %23 = vector.load %arg8[%c0_14, %c8] : memref<4x64xf32, #tpu.memory_space<vmem>>, vector<4x8xf32>
    tpu.vector_store %arg8[%c0_14, %c8], %22 {strides = array<i32>} : memref<4x64xf32, #tpu.memory_space<vmem>>, vector<4x8xf32>,
    %24 = vector.extract_strided_slice %9 {offsets = [0, 64], sizes = [4, 16], strides = [1, 1]} : vector<4x256xf32> to vector<4x16xf32>
    %25 = vector.extract_strided_slice %9 {offsets = [0, 80], sizes = [4, 16], strides = [1, 1]} : vector<4x256xf32> to vector<4x16xf32>
    %26 = arith.addf %24, %25 : vector<4x16xf32>
    %27 = arith.truncf %26 : vector<4x16xf32> to vector<4x16xbf16>
    %c0_15 = arith.constant 0 : index
    %c0_16 = arith.constant 0 : index
    %28 = vector.load %arg5[%c0_15, %c0_16] : memref<16x8xbf16, #tpu.memory_space<vmem>>, vector<16x8xbf16>
    %cst_17 = arith.constant dense<0.000000e+00> : vector<4x8xf32>
    %29 = tpu.matmul %27, %28, %cst_17 {dimension_numbers = #tpu.dot_dimension_numbers<[1], [0], [0], [1], [0, 0, 1, 1], [], []>} : vector<4x16xbf16>, vector<16x8xbf16>, vector<4x8xf32> -> vector<4x8xf32>
    %c0_18 = arith.constant 0 : index
    %c16 = arith.constant 16 : index
    %30 = vector.load %arg8[%c0_18, %c16] : memref<4x64xf32, #tpu.memory_space<vmem>>, vector<4x8xf32>
    tpu.vector_store %arg8[%c0_18, %c16], %29 {strides = array<i32>} : memref<4x64xf32, #tpu.memory_space<vmem>>, vector<4x8xf32>,
    %31 = vector.extract_strided_slice %9 {offsets = [0, 96], sizes = [4, 16], strides = [1, 1]} : vector<4x256xf32> to vector<4x16xf32>
    %32 = vector.extract_strided_slice %9 {offsets = [0, 112], sizes = [4, 16], strides = [1, 1]} : vector<4x256xf32> to vector<4x16xf32>
    %33 = arith.addf %31, %32 : vector<4x16xf32>
    %34 = arith.truncf %33 : vector<4x16xf32> to vector<4x16xbf16>
    %c0_19 = arith.constant 0 : index
    %c0_20 = arith.constant 0 : index
    %35 = vector.load %arg5[%c0_19, %c0_20] : memref<16x8xbf16, #tpu.memory_space<vmem>>, vector<16x8xbf16>
    %cst_21 = arith.constant dense<0.000000e+00> : vector<4x8xf32>
    %36 = tpu.matmul %34, %35, %cst_21 {dimension_numbers = #tpu.dot_dimension_numbers<[1], [0], [0], [1], [0, 0, 1, 1], [], []>} : vector<4x16xbf16>, vector<16x8xbf16>, vector<4x8xf32> -> vector<4x8xf32>
    %c0_22 = arith.constant 0 : index
    %c24 = arith.constant 24 : index
    %37 = vector.load %arg8[%c0_22, %c24] : memref<4x64xf32, #tpu.memory_space<vmem>>, vector<4x8xf32>
    tpu.vector_store %arg8[%c0_22, %c24], %36 {strides = array<i32>} : memref<4x64xf32, #tpu.memory_space<vmem>>, vector<4x8xf32>,
    %38 = vector.extract_strided_slice %9 {offsets = [0, 128], sizes = [4, 16], strides = [1, 1]} : vector<4x256xf32> to vector<4x16xf32>
    %39 = vector.extract_strided_slice %9 {offsets = [0, 144], sizes = [4, 16], strides = [1, 1]} : vector<4x256xf32> to vector<4x16xf32>
    %40 = arith.addf %38, %39 : vector<4x16xf32>
    %41 = arith.truncf %40 : vector<4x16xf32> to vector<4x16xbf16>
    %c0_23 = arith.constant 0 : index
    %c0_24 = arith.constant 0 : index
    %42 = vector.load %arg5[%c0_23, %c0_24] : memref<16x8xbf16, #tpu.memory_space<vmem>>, vector<16x8xbf16>
    %cst_25 = arith.constant dense<0.000000e+00> : vector<4x8xf32>
    %43 = tpu.matmul %41, %42, %cst_25 {dimension_numbers = #tpu.dot_dimension_numbers<[1], [0], [0], [1], [0, 0, 1, 1], [], []>} : vector<4x16xbf16>, vector<16x8xbf16>, vector<4x8xf32> -> vector<4x8xf32>
    %c0_26 = arith.constant 0 : index
    %c32 = arith.constant 32 : index
    %44 = vector.load %arg8[%c0_26, %c32] : memref<4x64xf32, #tpu.memory_space<vmem>>, vector<4x8xf32>
    tpu.vector_store %arg8[%c0_26, %c32], %43 {strides = array<i32>} : memref<4x64xf32, #tpu.memory_space<vmem>>, vector<4x8xf32>,
    %45 = vector.extract_strided_slice %9 {offsets = [0, 160], sizes = [4, 16], strides = [1, 1]} : vector<4x256xf32> to vector<4x16xf32>
    %46 = vector.extract_strided_slice %9 {offsets = [0, 176], sizes = [4, 16], strides = [1, 1]} : vector<4x256xf32> to vector<4x16xf32>
    %47 = arith.addf %45, %46 : vector<4x16xf32>
    %48 = arith.truncf %47 : vector<4x16xf32> to vector<4x16xbf16>
    %c0_27 = arith.constant 0 : index
    %c0_28 = arith.constant 0 : index
    %49 = vector.load %arg5[%c0_27, %c0_28] : memref<16x8xbf16, #tpu.memory_space<vmem>>, vector<16x8xbf16>
    %cst_29 = arith.constant dense<0.000000e+00> : vector<4x8xf32>
    %50 = tpu.matmul %48, %49, %cst_29 {dimension_numbers = #tpu.dot_dimension_numbers<[1], [0], [0], [1], [0, 0, 1, 1], [], []>} : vector<4x16xbf16>, vector<16x8xbf16>, vector<4x8xf32> -> vector<4x8xf32>
    %c0_30 = arith.constant 0 : index
    %c40 = arith.constant 40 : index
    %51 = vector.load %arg8[%c0_30, %c40] : memref<4x64xf32, #tpu.memory_space<vmem>>, vector<4x8xf32>
    tpu.vector_store %arg8[%c0_30, %c40], %50 {strides = array<i32>} : memref<4x64xf32, #tpu.memory_space<vmem>>, vector<4x8xf32>,
    %52 = vector.extract_strided_slice %9 {offsets = [0, 192], sizes = [4, 16], strides = [1, 1]} : vector<4x256xf32> to vector<4x16xf32>
    %53 = vector.extract_strided_slice %9 {offsets = [0, 208], sizes = [4, 16], strides = [1, 1]} : vector<4x256xf32> to vector<4x16xf32>
    %54 = arith.addf %52, %53 : vector<4x16xf32>
    %55 = arith.truncf %54 : vector<4x16xf32> to vector<4x16xbf16>
    %c0_31 = arith.constant 0 : index
    %c0_32 = arith.constant 0 : index
    %56 = vector.load %arg5[%c0_31, %c0_32] : memref<16x8xbf16, #tpu.memory_space<vmem>>, vector<16x8xbf16>
    %cst_33 = arith.constant dense<0.000000e+00> : vector<4x8xf32>
    %57 = tpu.matmul %55, %56, %cst_33 {dimension_numbers = #tpu.dot_dimension_numbers<[1], [0], [0], [1], [0, 0, 1, 1], [], []>} : vector<4x16xbf16>, vector<16x8xbf16>, vector<4x8xf32> -> vector<4x8xf32>
    %c0_34 = arith.constant 0 : index
    %c48 = arith.constant 48 : index
    %58 = vector.load %arg8[%c0_34, %c48] : memref<4x64xf32, #tpu.memory_space<vmem>>, vector<4x8xf32>
    tpu.vector_store %arg8[%c0_34, %c48], %57 {strides = array<i32>} : memref<4x64xf32, #tpu.memory_space<vmem>>, vector<4x8xf32>,
    %59 = vector.extract_strided_slice %9 {offsets = [0, 224], sizes = [4, 16], strides = [1, 1]} : vector<4x256xf32> to vector<4x16xf32>
    %60 = vector.extract_strided_slice %9 {offsets = [0, 240], sizes = [4, 16], strides = [1, 1]} : vector<4x256xf32> to vector<4x16xf32>
    %61 = arith.addf %59, %60 : vector<4x16xf32>
    %62 = arith.truncf %61 : vector<4x16xf32> to vector<4x16xbf16>
    %c0_35 = arith.constant 0 : index
    %c0_36 = arith.constant 0 : index
    %63 = vector.load %arg5[%c0_35, %c0_36] : memref<16x8xbf16, #tpu.memory_space<vmem>>, vector<16x8xbf16>
    %cst_37 = arith.constant dense<0.000000e+00> : vector<4x8xf32>
    %64 = tpu.matmul %62, %63, %cst_37 {dimension_numbers = #tpu.dot_dimension_numbers<[1], [0], [0], [1], [0, 0, 1, 1], [], []>} : vector<4x16xbf16>, vector<16x8xbf16>, vector<4x8xf32> -> vector<4x8xf32>
    %c0_38 = arith.constant 0 : index
    %c56 = arith.constant 56 : index
    %65 = vector.load %arg8[%c0_38, %c56] : memref<4x64xf32, #tpu.memory_space<vmem>>, vector<4x8xf32>
    tpu.vector_store %arg8[%c0_38, %c56], %64 {strides = array<i32>} : memref<4x64xf32, #tpu.memory_space<vmem>>, vector<4x8xf32>,
    %c0_39 = arith.constant 0 : index
    %c0_40 = arith.constant 0 : index
    %66 = vector.load %arg8[%c0_39, %c0_40] : memref<4x64xf32, #tpu.memory_space<vmem>>, vector<4x64xf32>
    %67 = arith.truncf %66 : vector<4x64xf32> to vector<4x64xbf16>
    %c0_41 = arith.constant 0 : index
    %c0_42 = arith.constant 0 : index
    %68 = vector.load %arg4[%c0_41, %c0_42] : memref<8x4xbf16, #tpu.memory_space<vmem>>, vector<8x4xbf16>
    %cst_43 = arith.constant dense<0.000000e+00> : vector<8x64xf32>
    %69 = tpu.matmul %68, %67, %cst_43 {dimension_numbers = #tpu.dot_dimension_numbers<[1], [0], [0], [1], [0, 0, 1, 1], [], []>} : vector<8x4xbf16>, vector<4x64xbf16>, vector<8x64xf32> -> vector<8x64xf32>
    %c0_44 = arith.constant 0 : index
    %c0_45 = arith.constant 0 : index
    %c0_46 = arith.constant 0 : index
    %70 = vector.load %arg7[%c0_44, %c0_45, %c0_46] : memref<1x8x64xf32, #tpu.memory_space<vmem>>, vector<1x8x64xf32>
    %71 = vector.shape_cast %70 : vector<1x8x64xf32> to vector<8x64xf32>
    %72 = vector.shape_cast %69 : vector<8x64xf32> to vector<1x8x64xf32>
    tpu.vector_store %arg7[%c0_44, %c0_45, %c0_46], %72 {strides = array<i32>} : memref<1x8x64xf32, #tpu.memory_space<vmem>>, vector<1x8x64xf32>,
    return
  }
  func.func @transform_0(%arg0: i32, %arg1: i32) -> (i32, i32) {
    %c0_i32 = arith.constant 0 : i32
    %c0_i32_0 = arith.constant 0 : i32
    %c0_i32_1 = arith.constant 0 : i32
    return %c0_i32, %c0_i32_0 : i32, i32
  }
  func.func @transform_1(%arg0: i32, %arg1: i32) -> (i32, i32) {
    %c0_i32 = arith.constant 0 : i32
    %c0_i32_0 = arith.constant 0 : i32
    %c0_i32_1 = arith.constant 0 : i32
    return %c0_i32, %c0_i32_0 : i32, i32
  }
  func.func @transform_2(%arg0: i32, %arg1: i32) -> (i32, i32) {
    %c0_i32 = arith.constant 0 : i32
    %c0_i32_0 = arith.constant 0 : i32
    %c0_i32_1 = arith.constant 0 : i32
    return %c0_i32, %c0_i32_0 : i32, i32
  }
  func.func @transform_3(%arg0: i32, %arg1: i32) -> (i32, i32) {
    %c0_i32 = arith.constant 0 : i32
    %c0_i32_0 = arith.constant 0 : i32
    %c0_i32_1 = arith.constant 0 : i32
    return %c0_i32, %c0_i32_0 : i32, i32
  }
  func.func @transform_4(%arg0: i32, %arg1: i32) -> (i32, i32, i32) {
    %c0_i32 = arith.constant 0 : i32
    %c0_i32_0 = arith.constant 0 : i32
    return %arg0, %c0_i32, %arg1 : i32, i32, i32
  }
  func.func @transform_5(%arg0: i32, %arg1: i32) -> (i32, i32, i32) {
    %c0_i32 = arith.constant 0 : i32
    %c0_i32_0 = arith.constant 0 : i32
    return %arg0, %c0_i32, %arg1 : i32, i32, i32
  }
}

</mosaic_0001>

<llo_original>
// kernel: tpu_custom_call.1
$region0: #{tpu_custom_call.1}
  #allocation0 [shape = 'u32[]', space=smem, size = 0x4, offset = 0x4, fixed_abs, tag = 'smem constant byte address 0x4 - core index']
  #allocation1 [shape = 'u32[144,128]{1,0:T(1,128)}', space=vmem, size = 0x12000, scoped, tag = 'internal scratch']
  #allocation2 [shape = 'f32[4,64]{1,0:T(4,128)}', space=vmem, size = 0x800, scoped, tag = 'scratch operand']
  %s0 = inlined_call_operand.vmem [shape: f32[4,1], index: 0, kind: input, shape index: {}]
  %s1 = inlined_call_operand.vmem [shape: f32[4,1], index: 1, kind: input, shape index: {}]
  %s2 = inlined_call_operand.vmem [shape: bf16[8,4], index: 2, kind: input, shape index: {}]
  %s3 = inlined_call_operand.vmem [shape: bf16[16,8], index: 3, kind: input, shape index: {}]
  %s4 = inlined_call_operand.vmem [shape: f32[2,4,256], index: 4, kind: input, shape index: {}]
  %s5 = inlined_call_operand.hbm [shape: f32[2,8,64], index: 5, kind: output, shape index: {}]
  %s6 = sld [smem:[#allocation0]]
  $region53: #{tpu_custom_call.1} parent=0
    _
  %s8 = ssub.s32 1, %s6
  %s9 = scalar_select 0, %s8, %s6
  $region1: #{tpu_custom_call.1} parent=0
    #allocation3 [shape = 'u8[8192]{0}', space=vmem, size = 0x2000, scoped, tag = 'output window, operand 0']
    #allocation4 [shape = 's32[2]{0}', space=sflag, size = 0x8, scoped, tag = 'scoped memory for tpu_custom_call.1']
    %10 = vsyncpa [#allocation4], 0
    %s11 = scalar_lea.sflag [#allocation4], 1
    %12 = vsyncpa %s11, 0
    loop: start=0, step=1, limit=4
    $region2: #{tpu_custom_call.1} parent=1 // loop_pre_header
      _
    $region3: #{tpu_custom_call.1} parent=1 // loop_header
      %s14 = sphi 0, %s18
      %p15 = scmp.ge.s32.totalorder %s14, 4
      %s21 = sphi 0, %s33
      %s22 = sphi 0, %s29
      %s23 = sphi 0, %s21
      %s24 = sphi 0, %s22
      %s25 = sphi 0, %s23
      %s26 = sphi 0, %s24
      %s34 = sphi 0, %s34
      %s36 = sphi 0, %s34
      %s37 = sphi 0, %s36
      %s51 = sphi 0, %s37
      %s55 = sphi 0, %s55
      %s57 = sphi 0, %s55
      %s58 = sphi 0, %s57
      %s72 = sphi 0, %s58
      %s76 = sphi 0, %s76
      %s78 = sphi 0, %s76
      %s79 = sphi 0, %s78
      %s93 = sphi 0, %s79
      %s97 = sphi 0, %s97
      %s99 = sphi 0, %s97
      %s100 = sphi 0, %s99
      %s114 = sphi 0, %s100
      %s122 = sphi 0, %s124
      %s125 = sphi 0, %s122
      %s126 = sphi 0, %s125
      %s142 = sphi 0, %s126
      %s150 = sphi 0, %s152
      %s153 = sphi 0, %s150
      %s154 = sphi 0, %s153
      %s170 = sphi 0, %s154
    $region4: #{tpu_custom_call.1} parent=1 // loop_header_branch
      %17 = sbr.rel (%p15) target = $region8
    $region5: #{tpu_custom_call.1} parent=1 // loop_body
      %s19 = ssub.s32 %s14, 1
      %s20 = ssub.s32 %s14, 2
      %s27 = sadd.s32 1, %s22
      %p28 = scmp.ge.s32.totalorder %s27, 1
      %s29 = scalar_select %p28, 0, %s27
      %s30 = sadd.s32 1, %s21
      %s31 = scalar_select %p28, %s30, %s21
      %p32 = scmp.ge.s32.totalorder %s31, 2
      %s33 = scalar_select %p32, 0, %s31
      %s35 = sadd.s32 %s34, 1
      %p38 = scmp.eq.s32.totalorder %s14, 1
      %p39 = scmp.ne.s32.totalorder %s34, %s36
      %p40 = scmp.eq.s32.totalorder %s14, 0
      %p41 = por %p39, %p40
      %p42 = scmp.ne.s32.totalorder %s34, %s36
      %p43 = scmp.eq.s32.totalorder %s19, 1
      %p44 = por %p42, %p43
      %p45 = scmp.ne.s32.totalorder %s36, %s37
      %p46 = scmp.eq.s32.totalorder %s19, 0
      %p47 = por %p45, %p46
      %p48 = scmp.ne.s32.totalorder %s36, %s37
      %p49 = scmp.eq.s32.totalorder %s20, 1
      %p50 = por %p48, %p49
      %p52 = scmp.ne.s32.totalorder %s37, %s51
      %p53 = scmp.eq.s32.totalorder %s20, 0
      %p54 = por %p52, %p53
      %s56 = sadd.s32 %s55, 1
      %p59 = scmp.eq.s32.totalorder %s14, 1
      %p60 = scmp.ne.s32.totalorder %s55, %s57
      %p61 = scmp.eq.s32.totalorder %s14, 0
      %p62 = por %p60, %p61
      %p63 = scmp.ne.s32.totalorder %s55, %s57
      %p64 = scmp.eq.s32.totalorder %s19, 1
      %p65 = por %p63, %p64
      %p66 = scmp.ne.s32.totalorder %s57, %s58
      %p67 = scmp.eq.s32.totalorder %s19, 0
      %p68 = por %p66, %p67
      %p69 = scmp.ne.s32.totalorder %s57, %s58
      %p70 = scmp.eq.s32.totalorder %s20, 1
      %p71 = por %p69, %p70
      %p73 = scmp.ne.s32.totalorder %s58, %s72
      %p74 = scmp.eq.s32.totalorder %s20, 0
      %p75 = por %p73, %p74
      %s77 = sadd.s32 %s76, 1
      %p80 = scmp.eq.s32.totalorder %s14, 1
      %p81 = scmp.ne.s32.totalorder %s76, %s78
      %p82 = scmp.eq.s32.totalorder %s14, 0
      %p83 = por %p81, %p82
      %p84 = scmp.ne.s32.totalorder %s76, %s78
      %p85 = scmp.eq.s32.totalorder %s19, 1
      %p86 = por %p84, %p85
      %p87 = scmp.ne.s32.totalorder %s78, %s79
      %p88 = scmp.eq.s32.totalorder %s19, 0
      %p89 = por %p87, %p88
      %p90 = scmp.ne.s32.totalorder %s78, %s79
      %p91 = scmp.eq.s32.totalorder %s20, 1
      %p92 = por %p90, %p91
      %p94 = scmp.ne.s32.totalorder %s79, %s93
      %p95 = scmp.eq.s32.totalorder %s20, 0
      %p96 = por %p94, %p95
      %s98 = sadd.s32 %s97, 1
      %p101 = scmp.eq.s32.totalorder %s14, 1
      %p102 = scmp.ne.s32.totalorder %s97, %s99
      %p103 = scmp.eq.s32.totalorder %s14, 0
      %p104 = por %p102, %p103
      %p105 = scmp.ne.s32.totalorder %s97, %s99
      %p106 = scmp.eq.s32.totalorder %s19, 1
      %p107 = por %p105, %p106
      %p108 = scmp.ne.s32.totalorder %s99, %s100
      %p109 = scmp.eq.s32.totalorder %s19, 0
      %p110 = por %p108, %p109
      %p111 = scmp.ne.s32.totalorder %s99, %s100
      %p112 = scmp.eq.s32.totalorder %s20, 1
      %p113 = por %p111, %p112
      %p115 = scmp.ne.s32.totalorder %s100, %s114
      %p116 = scmp.eq.s32.totalorder %s20, 0
      %p117 = por %p115, %p116
      %s118 = ssub.s32 %s21, %s33
      %s119 = ssub.s32 %s22, %s29
      %s120 = sor.u32 %s118, %s119
      %p121 = scmp.eq.s32.totalorder %s120, 0
      %s123 = sadd.s32 %s122, 1
      %s124 = scalar_select %p121, %s122, %s123
      %p127 = pneg %p121
      %p128 = scmp.eq.s32.totalorder %s14, 1
      %p129 = por %p127, %p128
      %p130 = scmp.ne.s32.totalorder %s122, %s125
      %p131 = scmp.eq.s32.totalorder %s14, 0
      %p132 = por %p130, %p131
      %p133 = scmp.ne.s32.totalorder %s122, %s125
      %p134 = scmp.eq.s32.totalorder %s19, 1
      %p135 = por %p133, %p134
      %p136 = scmp.ne.s32.totalorder %s125, %s126
      %p137 = scmp.eq.s32.totalorder %s19, 0
      %p138 = por %p136, %p137
      %p139 = scmp.ne.s32.totalorder %s125, %s126
      %p140 = scmp.eq.s32.totalorder %s20, 1
      %p141 = por %p139, %p140
      %p143 = scmp.ne.s32.totalorder %s126, %s142
      %p144 = scmp.eq.s32.totalorder %s20, 0
      %p145 = por %p143, %p144
      %s146 = ssub.s32 %s21, %s33
      %s147 = ssub.s32 %s22, %s29
      %s148 = sor.u32 %s146, %s147
      %p149 = scmp.eq.s32.totalorder %s148, 0
      %s151 = sadd.s32 %s150, 1
      %s152 = scalar_select %p149, %s150, %s151
      %p155 = pneg %p149
      %p156 = scmp.eq.s32.totalorder %s14, 1
      %p157 = por %p155, %p156
      %p158 = scmp.ne.s32.totalorder %s150, %s153
      %p159 = scmp.eq.s32.totalorder %s14, 0
      %p160 = por %p158, %p159
      %p161 = scmp.ne.s32.totalorder %s150, %s153
      %p162 = scmp.eq.s32.totalorder %s19, 1
      %p163 = por %p161, %p162
      %p164 = scmp.ne.s32.totalorder %s153, %s154
      %p165 = scmp.eq.s32.totalorder %s19, 0
      %p166 = por %p164, %p165
      %p167 = scmp.ne.s32.totalorder %s153, %s154
      %p168 = scmp.eq.s32.totalorder %s20, 1
      %p169 = por %p167, %p168
      %p171 = scmp.ne.s32.totalorder %s154, %s170
      %p172 = scmp.eq.s32.totalorder %s20, 0
      %p173 = por %p171, %p172
      %p174 = scmp.le.s32.totalorder 1, %s14
      %p175 = scmp.lt.s32.totalorder %s14, 3
      %p176 = pnand %p174, %p175
      %p177 = pneg %p176
      // Predicated region
      $region9: #{tpu_custom_call.1} parent=5 // pred_check
        _
      $region10: #{tpu_custom_call.1} parent=5 // pred_check_branch
        %179 = sbr.rel (%p176) target = $region12
      $region11: #{tpu_custom_call.1} parent=5 // pred_region
        %s180 = ssub.s32 %s14, 1
        // Predicated region
        $region13: #{tpu_custom_call.1} parent=11 // pred_check
          %p181 = pneg %p47
        $region14: #{tpu_custom_call.1} parent=11 // pred_check_branch
          %183 = sbr.rel (%p181) target = $region16
        $region15: #{tpu_custom_call.1} parent=11 // pred_region
          _
        $region16: #{tpu_custom_call.1} parent=11 // pred_fallthru
          _
        // Predicated region
        $region17: #{tpu_custom_call.1} parent=11 // pred_check
          %p184 = pneg %p68
        $region18: #{tpu_custom_call.1} parent=11 // pred_check_branch
          %186 = sbr.rel (%p184) target = $region20
        $region19: #{tpu_custom_call.1} parent=11 // pred_region
          _
        $region20: #{tpu_custom_call.1} parent=11 // pred_fallthru
          _
        // Predicated region
        $region21: #{tpu_custom_call.1} parent=11 // pred_check
          %p187 = pneg %p89
        $region22: #{tpu_custom_call.1} parent=11 // pred_check_branch
          %189 = sbr.rel (%p187) target = $region24
        $region23: #{tpu_custom_call.1} parent=11 // pred_region
          _
        $region24: #{tpu_custom_call.1} parent=11 // pred_fallthru
          _
        // Predicated region
        $region25: #{tpu_custom_call.1} parent=11 // pred_check
          %p190 = pneg %p110
        $region26: #{tpu_custom_call.1} parent=11 // pred_check_branch
          %192 = sbr.rel (%p190) target = $region28
        $region27: #{tpu_custom_call.1} parent=11 // pred_region
          _
        $region28: #{tpu_custom_call.1} parent=11 // pred_fallthru
          _
      $region12: #{tpu_custom_call.1} parent=5 // pred_fallthru
        _
      %p193 = scmp.lt.s32.totalorder %s14, 2
      // Predicated region
      $region29: #{tpu_custom_call.1} parent=5 // pred_check
        %p194 = pneg %p193
      $region30: #{tpu_custom_call.1} parent=5 // pred_check_branch
        %196 = sbr.rel (%p194) target = $region32
      $region31: #{tpu_custom_call.1} parent=5 // pred_region
        // Predicated region
        $region33: #{tpu_custom_call.1} parent=31 // pred_check
          %p197 = pneg %p132
        $region34: #{tpu_custom_call.1} parent=31 // pred_check_branch
          %199 = sbr.rel (%p197) target = $region36
        $region35: #{tpu_custom_call.1} parent=31 // pred_region
          %s200 = smul.u32 2, %s22
          %p201 = scmp.lt.s32.totalorder %s21, 1
          %s202 = scalar_select %p201, %s21, 1
          %p203 = scmp.lt.s32.totalorder %s200, 1
          %s204 = scalar_select %p203, %s200, 1
          %s205 = smul.addr %s202, 2
          %s206 = sadd.s32 %s204, %s205
          %s207 = smul.addr %s206, 4
          %s208 = scalar_lea.vmem %s4, %s207
          %s209 = smul.u32 2, %s22
        $region36: #{tpu_custom_call.1} parent=31 // pred_fallthru
          _
      $region32: #{tpu_custom_call.1} parent=5 // pred_fallthru
        _
      %p210 = scmp.le.s32.totalorder 1, %s14
      %p211 = scmp.lt.s32.totalorder %s14, 3
      %p212 = pnand %p210, %p211
      %p213 = pneg %p212
      // Predicated region
      $region37: #{tpu_custom_call.1} parent=5 // pred_check
        _
      $region38: #{tpu_custom_call.1} parent=5 // pred_check_branch
        %215 = sbr.rel (%p212) target = $region40
      $region39: #{tpu_custom_call.1} parent=5 // pred_region
        %s216 = ssub.s32 %s14, 1
        %p217 = pneg %p47
        %p218 = pneg %p44
        %p219 = pneg %p68
        %p220 = pneg %p65
        %p221 = pneg %p89
        %p222 = pneg %p86
        %p223 = pneg %p110
        %p224 = pneg %p107
        %s225 = smul.u32 2, %s24
        %p226 = scmp.lt.s32.totalorder %s23, 1
        %s227 = scalar_select %p226, %s23, 1
        %p228 = scmp.lt.s32.totalorder %s225, 1
        %s229 = scalar_select %p228, %s225, 1
        %s230 = smul.addr %s227, 2
        %s231 = sadd.s32 %s229, %s230
        %s232 = smul.addr %s231, 4
        %s233 = scalar_lea.vmem %s4, %s232
        %p234 = pneg %p138
        %p235 = pneg %p135
        %p236 = pneg %p166
        %p237 = pneg %p163
        %s238 = sand.u32 %s153, 1
        %s239 = scalar_lea.sflag [#allocation4], %s238
        %s240 = sand.u32 %s153, 1
        %s241 = smul.addr %s240, 8
        %s242 = scalar_lea.vmem [#allocation3], %s241
        %s243 = smul.u32 2, %s24
        %p244 = scmp.lt.s32.totalorder %s23, 1
        %s245 = scalar_select %p244, %s23, 1
        %p246 = scmp.lt.s32.totalorder %s243, 1
        %s247 = scalar_select %p246, %s243, 1
        %s248 = smul.addr %s245, 2
        %s249 = sadd.s32 %s247, %s248
        %s250 = smul.addr %s249, 4
        %s251 = scalar_lea.vmem %s4, %s250
        %s252 = smul.u32 2, %s24
        %v254 = vld [vmem:[%s251] sm:$0xff]
        %v255 = vld [vmem:[%s0] sm:$0xf]
        %257 = vset.pattern.permute.xlu0 0
        %258 = vperm.xlu0 %257, %v255
        %v259 = vpop.permute.xlu0 %258
        %v261 = vunpack.c.l.s4 839922192
        %v262 = vunpack.c.0.s8 %v261
        %v263 = vlaneseq
        %v264 = vshrl.u32 %v263, 7
        %v265 = vsub.s32 %v262, %v264
        %v266 = vrot.slane %v259, %v265
        %v268 = vmul.f32 %v254, %v266
        %v269 = vld [vmem:[%s1] sm:$0xf]
        %271 = vset.pattern.permute.xlu0 0
        %272 = vperm.xlu0 %271, %v269
        %v273 = vpop.permute.xlu0 %272
        %v275 = vunpack.c.l.s4 839922192
        %v276 = vunpack.c.0.s8 %v275
        %v277 = vlaneseq
        %v278 = vshrl.u32 %v277, 7
        %v279 = vsub.s32 %v276, %v278
        %v280 = vrot.slane %v273, %v279
        %v282 = vadd.f32 %v268, %v280
        %v283 = vmax.f32 %v282, 0.0
        %285 = vrot.lane.b32.xlu0 %v283, 112
        %v286 = vpop.permute.xlu0 %285
        %v288 = vadd.f32 %v283, %v286
        %v289 = vpack.c.bf16 %v288, %v288
        %v290 = vld [vmem:[%s3] sm:$0xf]
        %v291 = vld [vmem:[%s3 + $0x4] sm:$0xf]
        %v294 = vunpack.c.l.b16 %v290
        %v295 = vunpack.c.l.b16 %v291
        %v296 = vpack.c.b16 %v295, %v294
        %vm298 = vcmask 130048
        %v300 = vsel %vm298, %v289, 0
        %302 = vmatprep.subr.bf16.mxu0 0
        %303 = vmatpush1.bf16.msra.mxu0 %v296
        %304 = vmatprep.subr.bf16.mxu0 0
        %305 = vmatpush1.bf16.msra.mxu0 0
        %306 = vmatprep.subr.bf16.mxu0 0
        %307 = vmatpush1.bf16.msra.mxu0 0
        %308 = vmatprep.subr.bf16.mxu0 0
        %309 = vmatpush1.bf16.msra.mxu0 0
        %310 = vmatprep.subr.bf16.mxu0 0
        %311 = vmatpush1.bf16.msra.mxu0 0
        %312 = vmatprep.subr.bf16.mxu0 0
        %313 = vmatpush1.bf16.msra.mxu0 0
        %314 = vmatprep.subr.bf16.mxu0 0
        %315 = vmatpush1.bf16.msra.mxu0 0
        %316 = vmatprep.subr.bf16.mxu0 0
        %317 = vmatpush1.bf16.msra.mxu0 0
        %318 = vmatprep.subr.bf16.mxu0 0
        %319 = vmatpush1.bf16.msra.mxu0 0
        %320 = vmatprep.subr.bf16.mxu0 0
        %321 = vmatpush1.bf16.msra.mxu0 0
        %322 = vmatprep.subr.bf16.mxu0 0
        %323 = vmatpush1.bf16.msra.mxu0 0
        %324 = vmatprep.subr.bf16.mxu0 0
        %325 = vmatpush1.bf16.msra.mxu0 0
        %326 = vmatprep.subr.bf16.mxu0 0
        %327 = vmatpush1.bf16.msra.mxu0 0
        %328 = vmatprep.subr.bf16.mxu0 0
        %329 = vmatpush1.bf16.msra.mxu0 0
        %330 = vmatprep.subr.bf16.mxu0 0
        %331 = vmatpush1.bf16.msra.mxu0 0
        %332 = vmatprep.subr.bf16.mxu0 0
        %333 = vmatpush1.bf16.msra.mxu0 0
        %334 = vmatprep.mubr.bf16.mxu0 0
        %335 = vmatmul.mubr.bf16.gmra.mrb[0].mxu0 %v300
        %v336 = vpop.f32.mrb[0].mxu0
        %v337 = vadd.f32 0.0, %v336
        %v338 = vpop.f32.mrb[0].mxu0
        %v339 = vpop.f32.mrb[0].mxu0
        %v340 = vpop.f32.mrb[0].mxu0
        %341 = vdwg.mxu0
        %vm342 = vcmask 60416
        %343 = vst.msk [vmem:[#allocation2] sm:$0xf] %vm342, %v337
        %v344 = vld [vmem:[%s3] sm:$0xf]
        %v345 = vld [vmem:[%s3 + $0x4] sm:$0xf]
        %347 = vrot.lane.b32.xlu0 %v289, 96
        %v348 = vpop.permute.xlu0 %347
        %v351 = vunpack.c.l.b16 %v344
        %v352 = vunpack.c.l.b16 %v345
        %v353 = vpack.c.b16 %v352, %v351
        %v356 = vsel %vm298, %v348, 0
        %358 = vmatprep.subr.bf16.mxu0 0
        %359 = vmatpush1.bf16.msra.mxu0 %v353
        %360 = vmatprep.subr.bf16.mxu0 0
        %361 = vmatpush1.bf16.msra.mxu0 0
        %362 = vmatprep.subr.bf16.mxu0 0
        %363 = vmatpush1.bf16.msra.mxu0 0
        %364 = vmatprep.subr.bf16.mxu0 0
        %365 = vmatpush1.bf16.msra.mxu0 0
        %366 = vmatprep.subr.bf16.mxu0 0
        %367 = vmatpush1.bf16.msra.mxu0 0
        %368 = vmatprep.subr.bf16.mxu0 0
        %369 = vmatpush1.bf16.msra.mxu0 0
        %370 = vmatprep.subr.bf16.mxu0 0
        %371 = vmatpush1.bf16.msra.mxu0 0
        %372 = vmatprep.subr.bf16.mxu0 0
        %373 = vmatpush1.bf16.msra.mxu0 0
        %374 = vmatprep.subr.bf16.mxu0 0
        %375 = vmatpush1.bf16.msra.mxu0 0
        %376 = vmatprep.subr.bf16.mxu0 0
        %377 = vmatpush1.bf16.msra.mxu0 0
        %378 = vmatprep.subr.bf16.mxu0 0
        %379 = vmatpush1.bf16.msra.mxu0 0
        %380 = vmatprep.subr.bf16.mxu0 0
        %381 = vmatpush1.bf16.msra.mxu0 0
        %382 = vmatprep.subr.bf16.mxu0 0
        %383 = vmatpush1.bf16.msra.mxu0 0
        %384 = vmatprep.subr.bf16.mxu0 0
        %385 = vmatpush1.bf16.msra.mxu0 0
        %386 = vmatprep.subr.bf16.mxu0 0
        %387 = vmatpush1.bf16.msra.mxu0 0
        %388 = vmatprep.subr.bf16.mxu0 0
        %389 = vmatpush1.bf16.msra.mxu0 0
        %390 = vmatprep.mubr.bf16.mxu0 0
        %391 = vmatmul.mubr.bf16.gmra.mrb[0].mxu0 %v356
        %v392 = vpop.f32.mrb[0].mxu0
        %v393 = vadd.f32 0.0, %v392
        %v394 = vpop.f32.mrb[0].mxu0
        %v395 = vpop.f32.mrb[0].mxu0
        %v396 = vpop.f32.mrb[0].mxu0
        %397 = vdwg.mxu0
        %399 = vrot.lane.b32.xlu0 %v393, 8
        %v400 = vpop.permute.xlu0 %399
        %vm402 = vcmask 126016
        %403 = vst.msk [vmem:[#allocation2] sm:$0xf] %vm402, %v400
        %v404 = vld [vmem:[%s3] sm:$0xf]
        %v405 = vld [vmem:[%s3 + $0x4] sm:$0xf]
        %406 = vrot.lane.b32.xlu0 %v289, 64
        %v407 = vpop.permute.xlu0 %406
        %v410 = vunpack.c.l.b16 %v404
        %v411 = vunpack.c.l.b16 %v405
        %v412 = vpack.c.b16 %v411, %v410
        %v415 = vsel %vm298, %v407, 0
        %417 = vmatprep.subr.bf16.mxu0 0
        %418 = vmatpush1.bf16.msra.mxu0 %v412
        %419 = vmatprep.subr.bf16.mxu0 0
        %420 = vmatpush1.bf16.msra.mxu0 0
        %421 = vmatprep.subr.bf16.mxu0 0
        %422 = vmatpush1.bf16.msra.mxu0 0
        %423 = vmatprep.subr.bf16.mxu0 0
        %424 = vmatpush1.bf16.msra.mxu0 0
        %425 = vmatprep.subr.bf16.mxu0 0
        %426 = vmatpush1.bf16.msra.mxu0 0
        %427 = vmatprep.subr.bf16.mxu0 0
        %428 = vmatpush1.bf16.msra.mxu0 0
        %429 = vmatprep.subr.bf16.mxu0 0
        %430 = vmatpush1.bf16.msra.mxu0 0
        %431 = vmatprep.subr.bf16.mxu0 0
        %432 = vmatpush1.bf16.msra.mxu0 0
        %433 = vmatprep.subr.bf16.mxu0 0
        %434 = vmatpush1.bf16.msra.mxu0 0
        %435 = vmatprep.subr.bf16.mxu0 0
        %436 = vmatpush1.bf16.msra.mxu0 0
        %437 = vmatprep.subr.bf16.mxu0 0
        %438 = vmatpush1.bf16.msra.mxu0 0
        %439 = vmatprep.subr.bf16.mxu0 0
        %440 = vmatpush1.bf16.msra.mxu0 0
        %441 = vmatprep.subr.bf16.mxu0 0
        %442 = vmatpush1.bf16.msra.mxu0 0
        %443 = vmatprep.subr.bf16.mxu0 0
        %444 = vmatpush1.bf16.msra.mxu0 0
        %445 = vmatprep.subr.bf16.mxu0 0
        %446 = vmatpush1.bf16.msra.mxu0 0
        %447 = vmatprep.subr.bf16.mxu0 0
        %448 = vmatpush1.bf16.msra.mxu0 0
        %449 = vmatprep.mubr.bf16.mxu0 0
        %450 = vmatmul.mubr.bf16.gmra.mrb[0].mxu0 %v415
        %v451 = vpop.f32.mrb[0].mxu0
        %v452 = vadd.f32 0.0, %v451
        %v453 = vpop.f32.mrb[0].mxu0
        %v454 = vpop.f32.mrb[0].mxu0
        %v455 = vpop.f32.mrb[0].mxu0
        %456 = vdwg.mxu0
        %458 = vrot.lane.b32.xlu0 %v452, 16
        %v459 = vpop.permute.xlu0 %458
        %vm461 = vcmask 191616
        %462 = vst.msk [vmem:[#allocation2] sm:$0xf] %vm461, %v459
        %v463 = vld [vmem:[%s3] sm:$0xf]
        %v464 = vld [vmem:[%s3 + $0x4] sm:$0xf]
        %465 = vrot.lane.b32.xlu0 %v289, 32
        %v466 = vpop.permute.xlu0 %465
        %v469 = vunpack.c.l.b16 %v463
        %v470 = vunpack.c.l.b16 %v464
        %v471 = vpack.c.b16 %v470, %v469
        %v474 = vsel %vm298, %v466, 0
        %476 = vmatprep.subr.bf16.mxu0 0
        %477 = vmatpush1.bf16.msra.mxu0 %v471
        %478 = vmatprep.subr.bf16.mxu0 0
        %479 = vmatpush1.bf16.msra.mxu0 0
        %480 = vmatprep.subr.bf16.mxu0 0
        %481 = vmatpush1.bf16.msra.mxu0 0
        %482 = vmatprep.subr.bf16.mxu0 0
        %483 = vmatpush1.bf16.msra.mxu0 0
        %484 = vmatprep.subr.bf16.mxu0 0
        %485 = vmatpush1.bf16.msra.mxu0 0
        %486 = vmatprep.subr.bf16.mxu0 0
        %487 = vmatpush1.bf16.msra.mxu0 0
        %488 = vmatprep.subr.bf16.mxu0 0
        %489 = vmatpush1.bf16.msra.mxu0 0
        %490 = vmatprep.subr.bf16.mxu0 0
        %491 = vmatpush1.bf16.msra.mxu0 0
        %492 = vmatprep.subr.bf16.mxu0 0
        %493 = vmatpush1.bf16.msra.mxu0 0
        %494 = vmatprep.subr.bf16.mxu0 0
        %495 = vmatpush1.bf16.msra.mxu0 0
        %496 = vmatprep.subr.bf16.mxu0 0
        %497 = vmatpush1.bf16.msra.mxu0 0
        %498 = vmatprep.subr.bf16.mxu0 0
        %499 = vmatpush1.bf16.msra.mxu0 0
        %500 = vmatprep.subr.bf16.mxu0 0
        %501 = vmatpush1.bf16.msra.mxu0 0
        %502 = vmatprep.subr.bf16.mxu0 0
        %503 = vmatpush1.bf16.msra.mxu0 0
        %504 = vmatprep.subr.bf16.mxu0 0
        %505 = vmatpush1.bf16.msra.mxu0 0
        %506 = vmatprep.subr.bf16.mxu0 0
        %507 = vmatpush1.bf16.msra.mxu0 0
        %508 = vmatprep.mubr.bf16.mxu0 0
        %509 = vmatmul.mubr.bf16.gmra.mrb[0].mxu0 %v474
        %v510 = vpop.f32.mrb[0].mxu0
        %v511 = vadd.f32 0.0, %v510
        %v512 = vpop.f32.mrb[0].mxu0
        %v513 = vpop.f32.mrb[0].mxu0
        %v514 = vpop.f32.mrb[0].mxu0
        %515 = vdwg.mxu0
        %517 = vrot.lane.b32.xlu0 %v511, 24
        %v518 = vpop.permute.xlu0 %517
        %vm520 = vcmask 257216
        %521 = vst.msk [vmem:[#allocation2] sm:$0xf] %vm520, %v518
        %v522 = vrot.slane %v283, 4
        %v524 = vrot.slane %v286, 4
        %v526 = vadd.f32 %v522, %v524
        %v527 = vpack.c.bf16 %v526, %v526
        %v528 = vld [vmem:[%s3] sm:$0xf]
        %v529 = vld [vmem:[%s3 + $0x4] sm:$0xf]
        %v532 = vunpack.c.l.b16 %v528
        %v533 = vunpack.c.l.b16 %v529
        %v534 = vpack.c.b16 %v533, %v532
        %v537 = vsel %vm298, %v527, 0
        %539 = vmatprep.subr.bf16.mxu0 0
        %540 = vmatpush1.bf16.msra.mxu0 %v534
        %541 = vmatprep.subr.bf16.mxu0 0
        %542 = vmatpush1.bf16.msra.mxu0 0
        %543 = vmatprep.subr.bf16.mxu0 0
        %544 = vmatpush1.bf16.msra.mxu0 0
        %545 = vmatprep.subr.bf16.mxu0 0
        %546 = vmatpush1.bf16.msra.mxu0 0
        %547 = vmatprep.subr.bf16.mxu0 0
        %548 = vmatpush1.bf16.msra.mxu0 0
        %549 = vmatprep.subr.bf16.mxu0 0
        %550 = vmatpush1.bf16.msra.mxu0 0
        %551 = vmatprep.subr.bf16.mxu0 0
        %552 = vmatpush1.bf16.msra.mxu0 0
        %553 = vmatprep.subr.bf16.mxu0 0
        %554 = vmatpush1.bf16.msra.mxu0 0
        %555 = vmatprep.subr.bf16.mxu0 0
        %556 = vmatpush1.bf16.msra.mxu0 0
        %557 = vmatprep.subr.bf16.mxu0 0
        %558 = vmatpush1.bf16.msra.mxu0 0
        %559 = vmatprep.subr.bf16.mxu0 0
        %560 = vmatpush1.bf16.msra.mxu0 0
        %561 = vmatprep.subr.bf16.mxu0 0
        %562 = vmatpush1.bf16.msra.mxu0 0
        %563 = vmatprep.subr.bf16.mxu0 0
        %564 = vmatpush1.bf16.msra.mxu0 0
        %565 = vmatprep.subr.bf16.mxu0 0
        %566 = vmatpush1.bf16.msra.mxu0 0
        %567 = vmatprep.subr.bf16.mxu0 0
        %568 = vmatpush1.bf16.msra.mxu0 0
        %569 = vmatprep.subr.bf16.mxu0 0
        %570 = vmatpush1.bf16.msra.mxu0 0
        %571 = vmatprep.mubr.bf16.mxu0 0
        %572 = vmatmul.mubr.bf16.gmra.mrb[0].mxu0 %v537
        %v573 = vpop.f32.mrb[0].mxu0
        %v574 = vadd.f32 0.0, %v573
        %v575 = vpop.f32.mrb[0].mxu0
        %v576 = vpop.f32.mrb[0].mxu0
        %v577 = vpop.f32.mrb[0].mxu0
        %578 = vdwg.mxu0
        %580 = vrot.lane.b32.xlu0 %v574, 32
        %v581 = vpop.permute.xlu0 %580
        %vm583 = vcmask 322816
        %584 = vst.msk [vmem:[#allocation2] sm:$0xf] %vm583, %v581
        %585 = vrot.lane.b32.xlu0 %v283, 96
        %v586 = vpop.permute.xlu0 %585
        %v587 = vrot.slane %v586, 4
        %589 = vrot.lane.b32.xlu0 %v283, 80
        %v590 = vpop.permute.xlu0 %589
        %v591 = vrot.slane %v590, 4
        %v593 = vadd.f32 %v587, %v591
        %v594 = vpack.c.bf16 %v593, %v593
        %v595 = vld [vmem:[%s3] sm:$0xf]
        %v596 = vld [vmem:[%s3 + $0x4] sm:$0xf]
        %v599 = vunpack.c.l.b16 %v595
        %v600 = vunpack.c.l.b16 %v596
        %v601 = vpack.c.b16 %v600, %v599
        %v604 = vsel %vm298, %v594, 0
        %606 = vmatprep.subr.bf16.mxu0 0
        %607 = vmatpush1.bf16.msra.mxu0 %v601
        %608 = vmatprep.subr.bf16.mxu0 0
        %609 = vmatpush1.bf16.msra.mxu0 0
        %610 = vmatprep.subr.bf16.mxu0 0
        %611 = vmatpush1.bf16.msra.mxu0 0
        %612 = vmatprep.subr.bf16.mxu0 0
        %613 = vmatpush1.bf16.msra.mxu0 0
        %614 = vmatprep.subr.bf16.mxu0 0
        %615 = vmatpush1.bf16.msra.mxu0 0
        %616 = vmatprep.subr.bf16.mxu0 0
        %617 = vmatpush1.bf16.msra.mxu0 0
        %618 = vmatprep.subr.bf16.mxu0 0
        %619 = vmatpush1.bf16.msra.mxu0 0
        %620 = vmatprep.subr.bf16.mxu0 0
        %621 = vmatpush1.bf16.msra.mxu0 0
        %622 = vmatprep.subr.bf16.mxu0 0
        %623 = vmatpush1.bf16.msra.mxu0 0
        %624 = vmatprep.subr.bf16.mxu0 0
        %625 = vmatpush1.bf16.msra.mxu0 0
        %626 = vmatprep.subr.bf16.mxu0 0
        %627 = vmatpush1.bf16.msra.mxu0 0
        %628 = vmatprep.subr.bf16.mxu0 0
        %629 = vmatpush1.bf16.msra.mxu0 0
        %630 = vmatprep.subr.bf16.mxu0 0
        %631 = vmatpush1.bf16.msra.mxu0 0
        %632 = vmatprep.subr.bf16.mxu0 0
        %633 = vmatpush1.bf16.msra.mxu0 0
        %634 = vmatprep.subr.bf16.mxu0 0
        %635 = vmatpush1.bf16.msra.mxu0 0
        %636 = vmatprep.subr.bf16.mxu0 0
        %637 = vmatpush1.bf16.msra.mxu0 0
        %638 = vmatprep.mubr.bf16.mxu0 0
        %639 = vmatmul.mubr.bf16.gmra.mrb[0].mxu0 %v604
        %v640 = vpop.f32.mrb[0].mxu0
        %v641 = vadd.f32 0.0, %v640
        %v642 = vpop.f32.mrb[0].mxu0
        %v643 = vpop.f32.mrb[0].mxu0
        %v644 = vpop.f32.mrb[0].mxu0
        %645 = vdwg.mxu0
        %647 = vrot.lane.b32.xlu0 %v641, 40
        %v648 = vpop.permute.xlu0 %647
        %vm650 = vcmask 388416
        %651 = vst.msk [vmem:[#allocation2] sm:$0xf] %vm650, %v648
        %652 = vrot.lane.b32.xlu0 %v283, 64
        %v653 = vpop.permute.xlu0 %652
        %v654 = vrot.slane %v653, 4
        %656 = vrot.lane.b32.xlu0 %v283, 48
        %v657 = vpop.permute.xlu0 %656
        %v658 = vrot.slane %v657, 4
        %v660 = vadd.f32 %v654, %v658
        %v661 = vpack.c.bf16 %v660, %v660
        %v662 = vld [vmem:[%s3] sm:$0xf]
        %v663 = vld [vmem:[%s3 + $0x4] sm:$0xf]
        %v666 = vunpack.c.l.b16 %v662
        %v667 = vunpack.c.l.b16 %v663
        %v668 = vpack.c.b16 %v667, %v666
        %v671 = vsel %vm298, %v661, 0
        %673 = vmatprep.subr.bf16.mxu0 0
        %674 = vmatpush1.bf16.msra.mxu0 %v668
        %675 = vmatprep.subr.bf16.mxu0 0
        %676 = vmatpush1.bf16.msra.mxu0 0
        %677 = vmatprep.subr.bf16.mxu0 0
        %678 = vmatpush1.bf16.msra.mxu0 0
        %679 = vmatprep.subr.bf16.mxu0 0
        %680 = vmatpush1.bf16.msra.mxu0 0
        %681 = vmatprep.subr.bf16.mxu0 0
        %682 = vmatpush1.bf16.msra.mxu0 0
        %683 = vmatprep.subr.bf16.mxu0 0
        %684 = vmatpush1.bf16.msra.mxu0 0
        %685 = vmatprep.subr.bf16.mxu0 0
        %686 = vmatpush1.bf16.msra.mxu0 0
        %687 = vmatprep.subr.bf16.mxu0 0
        %688 = vmatpush1.bf16.msra.mxu0 0
        %689 = vmatprep.subr.bf16.mxu0 0
        %690 = vmatpush1.bf16.msra.mxu0 0
        %691 = vmatprep.subr.bf16.mxu0 0
        %692 = vmatpush1.bf16.msra.mxu0 0
        %693 = vmatprep.subr.bf16.mxu0 0
        %694 = vmatpush1.bf16.msra.mxu0 0
        %695 = vmatprep.subr.bf16.mxu0 0
        %696 = vmatpush1.bf16.msra.mxu0 0
        %697 = vmatprep.subr.bf16.mxu0 0
        %698 = vmatpush1.bf16.msra.mxu0 0
        %699 = vmatprep.subr.bf16.mxu0 0
        %700 = vmatpush1.bf16.msra.mxu0 0
        %701 = vmatprep.subr.bf16.mxu0 0
        %702 = vmatpush1.bf16.msra.mxu0 0
        %703 = vmatprep.subr.bf16.mxu0 0
        %704 = vmatpush1.bf16.msra.mxu0 0
        %705 = vmatprep.mubr.bf16.mxu0 0
        %706 = vmatmul.mubr.bf16.gmra.mrb[0].mxu0 %v671
        %v707 = vpop.f32.mrb[0].mxu0
        %v708 = vadd.f32 0.0, %v707
        %v709 = vpop.f32.mrb[0].mxu0
        %v710 = vpop.f32.mrb[0].mxu0
        %v711 = vpop.f32.mrb[0].mxu0
        %712 = vdwg.mxu0
        %714 = vrot.lane.b32.xlu0 %v708, 48
        %v715 = vpop.permute.xlu0 %714
        %vm717 = vcmask 454016
        %718 = vst.msk [vmem:[#allocation2] sm:$0xf] %vm717, %v715
        %719 = vrot.lane.b32.xlu0 %v283, 32
        %v720 = vpop.permute.xlu0 %719
        %v721 = vrot.slane %v720, 4
        %723 = vrot.lane.b32.xlu0 %v283, 16
        %v724 = vpop.permute.xlu0 %723
        %v725 = vrot.slane %v724, 4
        %v727 = vadd.f32 %v721, %v725
        %v728 = vpack.c.bf16 %v727, %v727
        %v729 = vld [vmem:[%s3] sm:$0xf]
        %v730 = vld [vmem:[%s3 + $0x4] sm:$0xf]
        %v733 = vunpack.c.l.b16 %v729
        %v734 = vunpack.c.l.b16 %v730
        %v735 = vpack.c.b16 %v734, %v733
        %v738 = vsel %vm298, %v728, 0
        %740 = vmatprep.subr.bf16.mxu0 0
        %741 = vmatpush1.bf16.msra.mxu0 %v735
        %742 = vmatprep.subr.bf16.mxu0 0
        %743 = vmatpush1.bf16.msra.mxu0 0
        %744 = vmatprep.subr.bf16.mxu0 0
        %745 = vmatpush1.bf16.msra.mxu0 0
        %746 = vmatprep.subr.bf16.mxu0 0
        %747 = vmatpush1.bf16.msra.mxu0 0
        %748 = vmatprep.subr.bf16.mxu0 0
        %749 = vmatpush1.bf16.msra.mxu0 0
        %750 = vmatprep.subr.bf16.mxu0 0
        %751 = vmatpush1.bf16.msra.mxu0 0
        %752 = vmatprep.subr.bf16.mxu0 0
        %753 = vmatpush1.bf16.msra.mxu0 0
        %754 = vmatprep.subr.bf16.mxu0 0
        %755 = vmatpush1.bf16.msra.mxu0 0
        %756 = vmatprep.subr.bf16.mxu0 0
        %757 = vmatpush1.bf16.msra.mxu0 0
        %758 = vmatprep.subr.bf16.mxu0 0
        %759 = vmatpush1.bf16.msra.mxu0 0
        %760 = vmatprep.subr.bf16.mxu0 0
        %761 = vmatpush1.bf16.msra.mxu0 0
        %762 = vmatprep.subr.bf16.mxu0 0
        %763 = vmatpush1.bf16.msra.mxu0 0
        %764 = vmatprep.subr.bf16.mxu0 0
        %765 = vmatpush1.bf16.msra.mxu0 0
        %766 = vmatprep.subr.bf16.mxu0 0
        %767 = vmatpush1.bf16.msra.mxu0 0
        %768 = vmatprep.subr.bf16.mxu0 0
        %769 = vmatpush1.bf16.msra.mxu0 0
        %770 = vmatprep.subr.bf16.mxu0 0
        %771 = vmatpush1.bf16.msra.mxu0 0
        %772 = vmatprep.mubr.bf16.mxu0 0
        %773 = vmatmul.mubr.bf16.gmra.mrb[0].mxu0 %v738
        %v774 = vpop.f32.mrb[0].mxu0
        %v775 = vadd.f32 0.0, %v774
        %v776 = vpop.f32.mrb[0].mxu0
        %v777 = vpop.f32.mrb[0].mxu0
        %v778 = vpop.f32.mrb[0].mxu0
        %779 = vdwg.mxu0
        %781 = vrot.lane.b32.xlu0 %v775, 56
        %v782 = vpop.permute.xlu0 %781
        %vm784 = vcmask 519616
        %785 = vst.msk [vmem:[#allocation2] sm:$0xf] %vm784, %v782
        %v786 = vld [vmem:[#allocation2] sm:$0xf]
        %v787 = vpack.c.bf16 %v786, %v786
        %v788 = vld [vmem:[%s2] sm:$0xf]
        %vm789 = vcmask 31744
        %v791 = vsel %vm789, %v788, 0
        %vm793 = vcmask 1041408
        %v795 = vsel %vm793, %v787, 0
        %797 = vmatprep.subr.bf16.mxu0 0
        %798 = vmatpush1.bf16.msra.mxu0 %v795
        %799 = vmatprep.subr.bf16.mxu0 0
        %800 = vmatpush1.bf16.msra.mxu0 0
        %801 = vmatprep.subr.bf16.mxu0 0
        %802 = vmatpush1.bf16.msra.mxu0 0
        %803 = vmatprep.subr.bf16.mxu0 0
        %804 = vmatpush1.bf16.msra.mxu0 0
        %805 = vmatprep.subr.bf16.mxu0 0
        %806 = vmatpush1.bf16.msra.mxu0 0
        %807 = vmatprep.subr.bf16.mxu0 0
        %808 = vmatpush1.bf16.msra.mxu0 0
        %809 = vmatprep.subr.bf16.mxu0 0
        %810 = vmatpush1.bf16.msra.mxu0 0
        %811 = vmatprep.subr.bf16.mxu0 0
        %812 = vmatpush1.bf16.msra.mxu0 0
        %813 = vmatprep.subr.bf16.mxu0 0
        %814 = vmatpush1.bf16.msra.mxu0 0
        %815 = vmatprep.subr.bf16.mxu0 0
        %816 = vmatpush1.bf16.msra.mxu0 0
        %817 = vmatprep.subr.bf16.mxu0 0
        %818 = vmatpush1.bf16.msra.mxu0 0
        %819 = vmatprep.subr.bf16.mxu0 0
        %820 = vmatpush1.bf16.msra.mxu0 0
        %821 = vmatprep.subr.bf16.mxu0 0
        %822 = vmatpush1.bf16.msra.mxu0 0
        %823 = vmatprep.subr.bf16.mxu0 0
        %824 = vmatpush1.bf16.msra.mxu0 0
        %825 = vmatprep.subr.bf16.mxu0 0
        %826 = vmatpush1.bf16.msra.mxu0 0
        %827 = vmatprep.subr.bf16.mxu0 0
        %828 = vmatpush1.bf16.msra.mxu0 0
        %829 = vmatprep.mubr.bf16.mxu0 0
        %830 = vmatmul.mubr.bf16.gmra.mrb[0].mxu0 %v791
        %v831 = vpop.f32.mrb[0].mxu0
        %v832 = vadd.f32 0.0, %v831
        %v833 = vpop.f32.mrb[0].mxu0
        %v834 = vpop.f32.mrb[0].mxu0
        %v835 = vpop.f32.mrb[0].mxu0
        %836 = vdwg.mxu0
        %vm837 = vcmask 523264
        %838 = vst.msk [vmem:[%s242] sm:$0xff] %vm837, %v832
        %s839 = sand.u32 %s153, 1
        %s840 = scalar_lea.sflag [#allocation4], %s839
        %s841 = sand.u32 %s153, 1
        %s842 = smul.addr %s841, 8
        %s843 = scalar_lea.vmem [#allocation3], %s842
        // Predicated region
        $region41: #{tpu_custom_call.1} parent=39 // pred_check
          %p844 = pneg %p163
        $region42: #{tpu_custom_call.1} parent=39 // pred_check_branch
          %846 = sbr.rel (%p844) target = $region44
        $region43: #{tpu_custom_call.1} parent=39 // pred_region
          %s848 = ssub.s32 128, 128
          %849 = vsyncadd %s840, %s848
          %s850 = sadd.s32 %s24, %s23
          %s851 = smul.addr %s850, 128
          %s852 = scalar_lea.hbm %s5, %s851
          %s854 = sshll.u32 %s843, 4
          %s855 = int_to_ptr.vmem [resolvable:$true] %s854
          %857 = dma.vmem_to_hbm [thread:$0]  %s855, 128, %s852, %s840
        $region44: #{tpu_custom_call.1} parent=39 // pred_fallthru
          _
      $region40: #{tpu_custom_call.1} parent=5 // pred_fallthru
        _
      %p858 = scmp.le.s32.totalorder 2, %s14
      // Predicated region
      $region45: #{tpu_custom_call.1} parent=5 // pred_check
        %p859 = pneg %p858
      $region46: #{tpu_custom_call.1} parent=5 // pred_check_branch
        %861 = sbr.rel (%p859) target = $region48
      $region47: #{tpu_custom_call.1} parent=5 // pred_region
        %s862 = ssub.s32 %s14, 2
        // Predicated region
        $region49: #{tpu_custom_call.1} parent=47 // pred_check
          %p863 = pneg %p169
        $region50: #{tpu_custom_call.1} parent=47 // pred_check_branch
          %865 = sbr.rel (%p863) target = $region52
        $region51: #{tpu_custom_call.1} parent=47 // pred_region
          %s866 = sand.u32 %s154, 1
          %s867 = scalar_lea.sflag [#allocation4], %s866
          %s868 = sand.u32 %s154, 1
          %s869 = smul.addr %s868, 8
          %s870 = scalar_lea.vmem [#allocation3], %s869
          %871 = dma.done %s867, 128
        $region52: #{tpu_custom_call.1} parent=47 // pred_fallthru
          _
      $region48: #{tpu_custom_call.1} parent=5 // pred_fallthru
        _
    $region6: #{tpu_custom_call.1} parent=1 // loop_footer
      %s18 = sadd.s32 1, %s14
    $region7: #{tpu_custom_call.1} parent=1 // loop_footer_branch
      %13 = sbr.rel target = $region3
    $region8: #{tpu_custom_call.1} parent=1 // loop_exit
      _
    %872 = vsyncpa [#allocation4], 1
    %s873 = scalar_lea.sflag [#allocation4], 1
    %874 = vsyncpa %s873, 1

</llo_original>
